<compile_context>
chip_gen: v5e
topology: v5e:2x2
jax: 0.10.0
libtpu: 0.0.40
codegen_flags: <defaults>
</compile_context>

<pallas_src>
import functools

import jax
import jax.numpy as jnp
from jax.experimental import pallas as pl
from jax.experimental.pallas import tpu as pltpu

LANES = 128
ELEMS_PER_ROW = LANES // 2      # 64 batch elements per 128-lane row (2 features each)
MIN_TILE = 8 * ELEMS_PER_ROW    # 512 batch elements = one dense (8, 128) f32 tile
TARGET_TILE = 128 * 1024        # ~1 MiB of input per grid step (per perf review)


def _round_up(n, m):
    return ((n + m - 1) // m) * m


@functools.cache
def _roll_matches_numpy() -> bool:
    """Empirically resolve pltpu.roll's rotation direction once (cached).

    np.roll convention means roll(x, 1, axis=-1)[l] == x[l-1].  Probing makes the
    lane de-interleave robust to convention differences across jax/Mosaic versions.
    """
    def probe(x_ref, o_ref):
        o_ref[...] = pltpu.roll(x_ref[...], 1, axis=1)

    x = jnp.tile(jax.lax.iota(jnp.float32, LANES)[None, :], (8, 1))
    out = pl.pallas_call(
        probe, out_shape=jax.ShapeDtypeStruct((8, LANES), jnp.float32)
    )(x)
    return bool(out[0, 1] == 0.0)


def _apply_activation(h, activation):
    if activation == "sigmoid":
        # 1 EUP push (tanh) + 1 FMA instead of exp + reciprocal (2 EUP pushes).
        return 0.5 * jnp.tanh(0.5 * h) + 0.5
    elif activation == "tanh":
        return jnp.tanh(h)
    elif activation == "relu":
        return jnp.maximum(h, 0.0)
    elif activation == "leakyrelu":
        return jnp.where(h >= 0.0, h, 0.08 * h)   # negative_slope=0.08 (SmallNet)
    raise ValueError("Unknown activation")


def _smallnet_kernel(params_ref, x_ref, o_ref, *, activation, roll_is_np):
    # x_ref: (R, 128) f32 in VMEM.  Lanes are feature-interleaved in the native
    # (B, 2) row-major order: lane 2i = x0 of element i, lane 2i+1 = x1.
    # params_ref: (32,) f32 in SMEM:
    #   w1[i, j] -> 6*i + j ; b1[j] -> 12 + j ; w2[j, k] -> 18 + 2*j + k ; b2[k] -> 30 + k
    x = x_ref[...]
    lane = jax.lax.broadcasted_iota(jnp.int32, x.shape, 1)
    is_f0 = (lane & 1) == 0                       # even lanes hold feature 0

    # Pair-partner values via XLU lane rotations (direction fixed by the probe).
    s_left, s_right = (1, LANES - 1) if roll_is_np else (LANES - 1, 1)
    from_left = pltpu.roll(x, s_left, axis=1)     # value of lane l-1 at lane l
    from_right = pltpu.roll(x, s_right, axis=1)   # value of lane l+1 at lane l
    x0 = jnp.where(is_f0, x, from_left)           # feature 0 broadcast to both lanes of its pair
    x1 = jnp.where(is_f0, from_right, x)          # feature 1 broadcast likewise
    # (Wrap-around lanes of the rolls are never selected: lane 0 is even, 127 is odd.)

    p = params_ref

    # Start the accumulator from the fc2 bias, interleaved per lane parity.
    acc = jnp.where(is_f0, p[30], p[31])
    # Fully unrolled VPU FMAs over the 6 hidden units -- no MXU involvement.
    for j in range(6):
        h = x0 * p[j] + x1 * p[6 + j] + p[12 + j]
        h = _apply_activation(h, activation)
        acc = acc + h * jnp.where(is_f0, p[18 + 2 * j], p[18 + 2 * j + 1])

    o_ref[...] = acc                              # full-width, unmasked lane-dense store


def _choose_tiling(batch):
    """Returns (padded_batch, tile_batch, num_steps); tile_batch % 512 == 0."""
    bp = _round_up(batch, MIN_TILE)
    if bp <= 2 * MIN_TILE:
        steps = 1                                 # tiny problem: single step
    elif bp <= TARGET_TILE:
        steps = 2                                 # engage both v7x TensorCores
    else:
        # >= 4 steps, even count (v7x dual-TC balance), ~1 MiB of input per step.
        steps = max(4, _round_up(pl.cdiv(bp, TARGET_TILE), 2))
    tb = _round_up(pl.cdiv(bp, steps), MIN_TILE)
    return tb * steps, tb, steps


@functools.partial(jax.jit, static_argnums=(5, 6))
def _smallnet_forward_jit(x, w1, b1, w2, b2, activation, roll_is_np):
    batch = x.shape[0]

    # Pack the 32 parameters into one SMEM scalar table (fused/hoisted under jit).
    params = jnp.concatenate(
        [w1.reshape(-1), b1.reshape(-1), w2.reshape(-1), b2.reshape(-1)]
    ).astype(jnp.float32)

    bp, tb, steps = _choose_tiling(batch)
    rows_total = (2 * bp) // LANES
    rows_blk = (2 * tb) // LANES                  # multiple of 8 by construction

    # Native-layout view of x: free reshapes only; pad only when B is unaligned.
    x_flat = x.astype(jnp.float32).reshape(-1)    # (2B,)
    if bp != batch:
        x_flat = jnp.pad(x_flat, (0, 2 * (bp - batch)))
    x2d = x_flat.reshape(rows_total, LANES)       # lane-interleaved (x0, x1, x0, x1, ...)

    kernel = functools.partial(
        _smallnet_kernel, activation=activation, roll_is_np=roll_is_np
    )
    out2d = pl.pallas_call(
        kernel,
        out_shape=jax.ShapeDtypeStruct((rows_total, LANES), jnp.float32),
        grid=(steps,),
        in_specs=[
            pl.BlockSpec(memory_space=pltpu.MemorySpace.SMEM),   # 32 params as SMEM scalars
            pl.BlockSpec((rows_blk, LANES), lambda i: (i, 0)),   # dense input tile
        ],
        out_specs=pl.BlockSpec((rows_blk, LANES), lambda i: (i, 0)),
        compiler_params=pltpu.CompilerParams(
            # Batch tiles are independent -> shard across TensorCores on v7x.
            dimension_semantics=("parallel",),
            # Double-buffered in+out blocks stay <= ~2-4 MiB: well under the
            # 16 MiB v5e scoped-VMEM default, so no vmem_limit override needed.
        ),
    )(params, x2d)

    out_flat = out2d.reshape(-1)
    if bp != batch:
        out_flat = out_flat[: 2 * batch]          # drop padded (garbage) elements
    return out_flat.reshape(batch, 2)             # native (B, 2) interleaved layout


def smallnet_forward(x, w1, b1, w2, b2, *, activation="relu"):
    """Forward pass of SmallNet via a single Pallas TPU kernel.

    x: (B, 2) float32; w1: (2, 6), b1: (6,), w2: (6, 2), b2: (2,). Returns (B, 2).
    """
    return _smallnet_forward_jit(x, w1, b1, w2, b2, activation, _roll_matches_numpy())


def _reference_forward(x, w1, b1, w2, b2, activation):
    hp = jax.lax.Precision.HIGHEST
    h = jnp.dot(x, w1, precision=hp) + b1
    if activation == "sigmoid":
        h = jax.nn.sigmoid(h)
    elif activation == "tanh":
        h = jnp.tanh(h)
    elif activation == "relu":
        h = jnp.maximum(h, 0.0)
    elif activation == "leakyrelu":
        h = jnp.where(h >= 0.0, h, 0.08 * h)
    else:
        raise ValueError("Unknown activation")
    return jnp.dot(h, w2, precision=hp) + b2


if __name__ == "__main__":
    key = jax.random.PRNGKey(0)
    k_x, k_w1, k_b1, k_w2, k_b2 = jax.random.split(key, 5)

    # Deterministic parameter init (PyTorch-like uniform bounds, synthetic).
    w1 = jax.random.uniform(k_w1, (2, 6), minval=-(2 ** -0.5), maxval=2 ** -0.5,
                            dtype=jnp.float32)
    b1 = jax.random.uniform(k_b1, (6,), minval=-(2 ** -0.5), maxval=2 ** -0.5,
                            dtype=jnp.float32)
    w2 = jax.random.uniform(k_w2, (6, 2), minval=-(6 ** -0.5), maxval=6 ** -0.5,
                            dtype=jnp.float32)
    b2 = jax.random.uniform(k_b2, (6 ** -0.5 and 2,), minval=-(6 ** -0.5),
                            maxval=6 ** -0.5, dtype=jnp.float32)

    ok = True
    # B=8: single padded tile; B=300: padding path; B=4096: 2-step grid;
    # B=140000: >=4-step large-tile path (still only ~1 MiB of data).
    for B in (8, 300, 4096, 140000):
        x = jax.random.normal(k_x, (B, 2), dtype=jnp.float32)
        for act in ("sigmoid", "tanh", "relu", "leakyrelu"):
            out = jax.block_until_ready(
                smallnet_forward(x, w1, b1, w2, b2, activation=act))
            ref = _reference_forward(x, w1, b1, w2, b2, act)
            if out.shape != (B, 2) or not jnp.allclose(out, ref, atol=1e-5, rtol=1e-5):
                ok = False
                print(f"MISMATCH for B={B} activation={act}")

    if ok:
        print("KERNEL_OK")
</pallas_src>

<mosaic_0001>
module attributes {stable_mosaic.version = 11 : i64} {
  func.func @probe(%arg0: memref<8x128xf32, #tpu.memory_space<vmem>>, %arg1: memref<8x128xf32, #tpu.memory_space<vmem>>) attributes {dimension_semantics = [], scalar_prefetch = 0 : i64, scratch_operands = 0 : i64, tpu.core_type = #tpu.core_type<tc>} {
    %c0 = arith.constant 0 : index
    %c0_0 = arith.constant 0 : index
    %0 = vector.load %arg0[%c0, %c0_0] : memref<8x128xf32, #tpu.memory_space<vmem>>, vector<8x128xf32>
    %c1_i32 = arith.constant 1 : i32
    %1 = tpu.dynamic_rotate %0 by %c1_i32 dim 1 : vector<8x128xf32>, i32 -> vector<8x128xf32>
    %c0_1 = arith.constant 0 : index
    %c0_2 = arith.constant 0 : index
    %2 = vector.load %arg1[%c0_1, %c0_2] : memref<8x128xf32, #tpu.memory_space<vmem>>, vector<8x128xf32>
    tpu.vector_store %arg1[%c0_1, %c0_2], %1 {strides = array<i32>} : memref<8x128xf32, #tpu.memory_space<vmem>>, vector<8x128xf32>,
    return
  }
}

</mosaic_0001>

<llo_original>
// kernel: tpu_custom_call.1
$region0: #{tpu_custom_call.1}
  #allocation0 [shape = 'u32[]', space=smem, size = 0x4, offset = 0x4, fixed_abs, tag = 'smem constant byte address 0x4 - core index']
  #allocation1 [shape = 'u32[72,128]{1,0:T(1,128)}', space=vmem, size = 0x9000, scoped, tag = 'internal scratch']
  %s0 = inlined_call_operand.hbm [shape: f32[8,128], index: 0, kind: input, shape index: {}]
  %s1 = inlined_call_operand.hbm [shape: f32[8,128], index: 1, kind: output, shape index: {}]
  %s2 = sld [smem:[#allocation0]]
  $region18: #{tpu_custom_call.1} parent=0
    _
  %s4 = ssub.s32 1, %s2
  %s5 = scalar_select 0, %s4, %s2
  $region1: #{tpu_custom_call.1} parent=0
    #allocation2 [shape = 'u8[4096]{0}', space=vmem, size = 0x1000, scoped, tag = 'input window, operand 0, single buffered']
    #allocation3 [shape = 's32[1]{0}', space=sflag, size = 0x4, scoped, tag = 'scoped memory for tpu_custom_call.1']
    #allocation4 [shape = 's32[1]{0}', space=sflag, size = 0x4, scoped, tag = 'scoped memory for tpu_custom_call.1']
    #allocation5 [shape = 'u8[4096]{0}', space=vmem, size = 0x1000, scoped, tag = 'output window, operand 0, single buffered']
    %6 = vsyncpa [#allocation3], 0
    %7 = vsyncpa [#allocation4], 0
    // Predicated region
    $region2: #{tpu_custom_call.1} parent=1 // pred_check
      _
    $region3: #{tpu_custom_call.1} parent=1 // pred_check_branch
      %9 = sbr.rel (0) target = $region5
    $region4: #{tpu_custom_call.1} parent=1 // pred_region
      %11 = vsyncadd [#allocation3], 0
      %s13 = sshll.u32 %s0, 4
      %s14 = int_to_ptr.hbm [resolvable:$true] %s13
      %s15 = sshll.u32 [#allocation2], 4
      %s16 = int_to_ptr.vmem [resolvable:$true] %s15
      %18 = dma.hbm_to_vmem [thread:$0]  %s14, 128, %s16, [#allocation3]
    $region5: #{tpu_custom_call.1} parent=1 // pred_fallthru
      _
    // Predicated region
    $region6: #{tpu_custom_call.1} parent=1 // pred_check
      _
    $region7: #{tpu_custom_call.1} parent=1 // pred_check_branch
      %20 = sbr.rel (0) target = $region9
    $region8: #{tpu_custom_call.1} parent=1 // pred_region
      %22 = dma.done [#allocation3], 128
    $region9: #{tpu_custom_call.1} parent=1 // pred_fallthru
      _
    %v23 = vld [vmem:[#allocation2] sm:$0xff]
    %24 = vrot.lane.b32.xlu0 %v23, 1
    %v25 = vpop.permute.xlu0 %24
    %26 = vst [vmem:[#allocation5] sm:$0xff] %v25
    // Predicated region
    $region10: #{tpu_custom_call.1} parent=1 // pred_check
      _
    $region11: #{tpu_custom_call.1} parent=1 // pred_check_branch
      %28 = sbr.rel (0) target = $region13
    $region12: #{tpu_custom_call.1} parent=1 // pred_region
      %30 = vsyncadd [#allocation4], 0
      %s32 = sshll.u32 [#allocation5], 4
      %s33 = int_to_ptr.vmem [resolvable:$true] %s32
      %s34 = sshll.u32 %s1, 4
      %s35 = int_to_ptr.hbm [resolvable:$true] %s34
      %37 = dma.vmem_to_hbm [thread:$0]  %s33, 128, %s35, [#allocation4]
    $region13: #{tpu_custom_call.1} parent=1 // pred_fallthru
      _
    // Predicated region
    $region14: #{tpu_custom_call.1} parent=1 // pred_check
      _
    $region15: #{tpu_custom_call.1} parent=1 // pred_check_branch
      %39 = sbr.rel (0) target = $region17
    $region16: #{tpu_custom_call.1} parent=1 // pred_region
      %41 = dma.done [#allocation4], 128
    $region17: #{tpu_custom_call.1} parent=1 // pred_fallthru
      _
    %42 = vsyncpa [#allocation3], 1
    %43 = vsyncpa [#allocation4], 1

</llo_original>
